<compile_context>
chip_gen: v7x
topology: tpu7x:2x2x1
jax: 0.10.0
libtpu: 0.0.40
codegen_flags: <defaults>
</compile_context>

<pallas_src>
import math

import jax
import jax.numpy as jnp
from jax.experimental import pallas as pl
from jax.experimental.pallas import tpu as pltpu

EPS = 1e-20          # module's fuzz factor (documented; see EPS2 note below)
EPS2 = 1e-30         # guard under the fused rsqrt; gives scale == 0 at n == 0


def _make_squash_kernel(d_pad, pd, precision):
    """Kernel factory closing over static segment geometry."""

    def kernel(s_ref, o_ref):
        # s_ref / o_ref: (TILE_ROWS, pd) VMEM tiles, pd a multiple of 128.
        s = s_ref[...].astype(jnp.float32)

        # Block-diagonal segment matrix M[i, j] = 1 iff lanes i, j belong to the
        # same capsule (same group of d_pad lanes). Built in-kernel with iota +
        # shifts (cheap VALU, hidden under the HBM window); pack == 1 -> all-ones.
        if pd == d_pad:
            m = jnp.ones((pd, pd), dtype=jnp.float32)
        else:
            shift = d_pad.bit_length() - 1  # d_pad is a power of two here
            li = jax.lax.broadcasted_iota(jnp.int32, (pd, pd), 0) >> shift
            lj = jax.lax.broadcasted_iota(jnp.int32, (pd, pd), 1) >> shift
            m = jnp.where(li == lj, 1.0, 0.0).astype(jnp.float32)

        # Segmented squared norm via the MXU: (s*s) @ M puts, at every lane, the
        # sum of x^2 over that lane's capsule segment (already broadcast across
        # its lanes).  HIGHEST precision keeps f32 accuracy (default precision
        # would truncate s*s to a single bf16 pass -> ~1e-3 relative error).
        n2 = jnp.dot(
            s * s,
            m,
            preferred_element_type=jnp.float32,
            precision=precision,
        )

        # scale = n^2 / (1 + n^2) / (n + eps)  ==  n2 * rsqrt(n2 * (1 + n2)^2)
        # for n > 0, and exactly 0 at n = 0.  Single EUP rsqrt; eps guard moved
        # under the rsqrt (slight eps-semantics change, << 1e-5 difference).
        one_p = 1.0 + n2
        scale = n2 * jax.lax.rsqrt(n2 * one_p * one_p + EPS2)

        o_ref[...] = (scale * s).astype(o_ref.dtype)

    return kernel


def _pick_tile(p_rows, max_block_rows):
    """Row-tile size: >=4 pipelined grid steps with >=512-row blocks when possible."""
    max_tile = max(8, (max_block_rows // 8) * 8)
    tile = max(512, -(-p_rows // 4))        # aim for >= 4 grid steps
    tile = min(((tile + 7) // 8) * 8, max_tile)
    if tile >= p_rows:
        # Tiny input: one full-extent block (block dim == full array dim is legal).
        return p_rows
    return tile


def squash(s, *, max_block_rows=4096, precision=jax.lax.Precision.HIGHEST):
    """Capsule squash over the last dim; matches the PyTorch module's forward."""
    orig_shape = s.shape
    orig_dtype = s.dtype
    d = orig_shape[-1]
    rows = math.prod(orig_shape[:-1]) if len(orig_shape) > 1 else 1

    # Pad the capsule dim up to a divisor of 128 (powers of two) so the packed
    # lane width is exactly 128; for d > 128 pad to a multiple of 128.
    if d <= 128:
        d_pad = max(1, pl.next_power_of_2(d))
    else:
        d_pad = ((d + 127) // 128) * 128
    pack = max(1, 128 // d_pad)
    rows_pad = -(-rows // pack) * pack

    x = s.reshape(rows, d)
    if d_pad != d:
        x = jnp.pad(x, ((0, 0), (0, d_pad - d)))          # zero lanes -> n2 unchanged
    if rows_pad != rows:
        x = jnp.pad(x, ((0, rows_pad - rows), (0, 0)))     # zero rows, sliced off below

    p_rows = rows_pad // pack
    pd = d_pad * pack
    x = x.reshape(p_rows, pd)

    tile = _pick_tile(p_rows, max_block_rows)
    grid = (pl.cdiv(p_rows, tile),)

    out = pl.pallas_call(
        _make_squash_kernel(d_pad, pd, precision),
        out_shape=jax.ShapeDtypeStruct((p_rows, pd), orig_dtype),
        grid_spec=pl.GridSpec(
            grid=grid,
            in_specs=[pl.BlockSpec((tile, pd), lambda i: (i, 0))],
            out_specs=pl.BlockSpec((tile, pd), lambda i: (i, 0)),
        ),
        compiler_params=pltpu.CompilerParams(
            dimension_semantics=("parallel",),
            vmem_limit_bytes=32 * 1024 * 1024,
        ),
    )(x)

    out = out.reshape(rows_pad, d_pad)
    if rows_pad != rows:
        out = out[:rows]
    if d_pad != d:
        out = out[:, :d]
    return out.reshape(orig_shape)


def squash_ref(s):
    # Pure-JAX reference matching the PyTorch forward exactly.
    n = jnp.linalg.norm(s.astype(jnp.float32), axis=-1, keepdims=True)
    out = (n ** 2) / (1.0 + n ** 2) / (n + EPS) * s.astype(jnp.float32)
    return out.astype(s.dtype)


if __name__ == "__main__":
    key = jax.random.PRNGKey(0)
    k1, k2, k3 = jax.random.split(key, 3)

    # Shape implied by the capsule module: (batch, num_capsules, capsule_dim).
    x1 = jax.random.normal(k1, (2, 8, 32), dtype=jnp.float32)   # lane-packed, d | 128
    # capsule_dim not dividing 128 -> zero-padded 24 -> 32 (lane-dense path).
    x2 = jax.random.normal(k2, (3, 5, 24), dtype=jnp.float32)
    # Multi-block grid with a partial (masked) tail block.
    x3 = jax.random.normal(k3, (4, 96, 32), dtype=jnp.float32)

    cases = ((x1, {}), (x2, {}), (x3, {"max_block_rows": 40}))
    for x, kwargs in cases:
        y = squash(x, **kwargs)
        jax.block_until_ready(y)
        y_ref = squash_ref(x)
        assert y.shape == x.shape and y.dtype == x.dtype
        assert jnp.allclose(y, y_ref, atol=1e-5, rtol=1e-5), "mismatch vs reference"

    print("KERNEL_OK")
</pallas_src>

<mosaic_0001>
module attributes {stable_mosaic.version = 11 : i64} {
  func.func @kernel(%arg0: i32, %arg1: memref<4x128xf32, #tpu.memory_space<vmem>>, %arg2: memref<4x128xf32, #tpu.memory_space<vmem>>) attributes {dimension_semantics = [#tpu.dimension_semantics<parallel>], iteration_bounds = array<i64: 1>, scalar_prefetch = 0 : i64, scratch_operands = 0 : i64, tpu.core_type = #tpu.core_type<tc>, window_params = [{transform_indices = @transform_0, window_bounds = array<i64: 4, 128>}, {transform_indices = @transform_1, window_bounds = array<i64: 4, 128>}]} {
    %c0 = arith.constant 0 : index
    %c0_0 = arith.constant 0 : index
    %0 = vector.load %arg1[%c0, %c0_0] : memref<4x128xf32, #tpu.memory_space<vmem>>, vector<4x128xf32>
    %1 = tpu.iota {dimensions = array<i32: 0>} : vector<128x128xi32>
    %c5_i32 = arith.constant 5 : i32
    %2 = vector.broadcast %c5_i32 : i32 to vector<128x128xi32>
    %3 = arith.shrsi %1, %2 : vector<128x128xi32>
    %4 = tpu.iota {dimensions = array<i32: 1>} : vector<128x128xi32>
    %c5_i32_1 = arith.constant 5 : i32
    %5 = vector.broadcast %c5_i32_1 : i32 to vector<128x128xi32>
    %6 = arith.shrsi %4, %5 : vector<128x128xi32>
    %7 = arith.cmpi eq, %3, %6 : vector<128x128xi32>
    %cst = arith.constant 1.000000e+00 : f32
    %cst_2 = arith.constant 0.000000e+00 : f32
    %8 = vector.broadcast %cst : f32 to vector<128x128xf32>
    %9 = vector.broadcast %cst_2 : f32 to vector<128x128xf32>
    %10 = arith.select %7, %8, %9 : vector<128x128xi1>, vector<128x128xf32>
    %11 = arith.mulf %0, %0 : vector<4x128xf32>
    %cst_3 = arith.constant dense<0.000000e+00> : vector<4x128xf32>
    %12 = tpu.matmul %11, %10, %cst_3 {dimension_numbers = #tpu.dot_dimension_numbers<[1], [0], [0], [1], [0, 0, 1, 1], [], []>, precision = #tpu.contract_precision<fp32>} : vector<4x128xf32>, vector<128x128xf32>, vector<4x128xf32> -> vector<4x128xf32>
    %cst_4 = arith.constant 1.000000e+00 : f32
    %13 = vector.broadcast %cst_4 : f32 to vector<4x128xf32>
    %14 = arith.addf %13, %12 : vector<4x128xf32>
    %15 = arith.mulf %12, %14 : vector<4x128xf32>
    %16 = arith.mulf %15, %14 : vector<4x128xf32>
    %cst_5 = arith.constant 1.000000e-30 : f32
    %17 = vector.broadcast %cst_5 : f32 to vector<4x128xf32>
    %18 = arith.addf %16, %17 : vector<4x128xf32>
    %19 = math.rsqrt %18 : vector<4x128xf32>
    %20 = arith.mulf %12, %19 : vector<4x128xf32>
    %21 = arith.mulf %20, %0 : vector<4x128xf32>
    %c0_6 = arith.constant 0 : index
    %c0_7 = arith.constant 0 : index
    %22 = vector.load %arg2[%c0_6, %c0_7] : memref<4x128xf32, #tpu.memory_space<vmem>>, vector<4x128xf32>
    tpu.vector_store %arg2[%c0_6, %c0_7], %21 {strides = array<i32>} : memref<4x128xf32, #tpu.memory_space<vmem>>, vector<4x128xf32>,
    return
  }
  func.func @transform_0(%arg0: i32) -> (i32, i32) {
    %c0_i32 = arith.constant 0 : i32
    %c0_i32_0 = arith.constant 0 : i32
    return %arg0, %c0_i32 : i32, i32
  }
  func.func @transform_1(%arg0: i32) -> (i32, i32) {
    %c0_i32 = arith.constant 0 : i32
    %c0_i32_0 = arith.constant 0 : i32
    return %arg0, %c0_i32 : i32, i32
  }
}

</mosaic_0001>

<llo_original>
// kernel: tpu_custom_call.1
$region0: #{tpu_custom_call.1}
  #allocation0 [shape = 'u32[]', space=smem, size = 0x4, offset = 0x4, fixed_abs, tag = 'smem constant byte address 0x4 - core index']
  #allocation1 [shape = 'u32[144,128]{1,0:T(1,128)}', space=vmem, size = 0x12000, scoped, tag = 'internal scratch']
  %s0 = inlined_call_operand.hbm [shape: f32[4,128], index: 0, kind: input, shape index: {}]
  %s1 = inlined_call_operand.hbm [shape: f32[4,128], index: 1, kind: output, shape index: {}]
  %s2 = sld [smem:[#allocation0]]
  $region18: #{tpu_custom_call.1} parent=0
    _
  %s4 = ssub.s32 1, %s2
  %s5 = scalar_select 0, %s4, %s2
  $region1: #{tpu_custom_call.1} parent=0
    #allocation2 [shape = 'u8[2048]{0}', space=vmem, size = 0x800, scoped, tag = 'input window, operand 0, single buffered']
    #allocation3 [shape = 's32[1]{0}', space=sflag, size = 0x4, scoped, tag = 'scoped memory for tpu_custom_call.1']
    #allocation4 [shape = 's32[1]{0}', space=sflag, size = 0x4, scoped, tag = 'scoped memory for tpu_custom_call.1']
    #allocation5 [shape = 'u8[2048]{0}', space=vmem, size = 0x800, scoped, tag = 'output window, operand 0, single buffered']
    %6 = vsyncpa [#allocation3], 0
    %7 = vsyncpa [#allocation4], 0
    // Predicated region
    $region2: #{tpu_custom_call.1} parent=1 // pred_check
      _
    $region3: #{tpu_custom_call.1} parent=1 // pred_check_branch
      %9 = sbr.rel (0) target = $region5
    $region4: #{tpu_custom_call.1} parent=1 // pred_region
      %s11 = ssub.s32 64, 64
      %12 = vsyncadd [#allocation3], %s11
      %s14 = sshll.u32 [#allocation2], 4
      %s15 = int_to_ptr.vmem [resolvable:$true] %s14
      %17 = dma.hbm_to_vmem [thread:$0]  %s0, 64, %s15, [#allocation3]
    $region5: #{tpu_custom_call.1} parent=1 // pred_fallthru
      _
    // Predicated region
    $region6: #{tpu_custom_call.1} parent=1 // pred_check
      _
    $region7: #{tpu_custom_call.1} parent=1 // pred_check_branch
      %19 = sbr.rel (0) target = $region9
    $region8: #{tpu_custom_call.1} parent=1 // pred_region
      %20 = dma.done [#allocation3], 64
    $region9: #{tpu_custom_call.1} parent=1 // pred_fallthru
      _
    %v21 = vld [vmem:[#allocation2] sm:$0xf]
    %v22 = vlaneseq
    %v23 = vshrl.u32 %v22, 7
    %v24 = vadd.s32 %v23, 8
    %v25 = vadd.s32 %v23, 16
    %v26 = vadd.s32 %v23, 24
    %v27 = vadd.s32 %v23, 32
    %v28 = vadd.s32 %v23, 40
    %v29 = vadd.s32 %v23, 48
    %v30 = vadd.s32 %v23, 56
    %v31 = vadd.s32 %v23, 64
    %v32 = vadd.s32 %v23, 72
    %v33 = vadd.s32 %v23, 80
    %v34 = vadd.s32 %v23, 88
    %v35 = vadd.s32 %v23, 96
    %v36 = vadd.s32 %v23, 104
    %v37 = vadd.s32 %v23, 112
    %v38 = vadd.s32 %v23, 120
    %v39 = vshra.s32 %v23, 5
    %v40 = vshra.s32 %v24, 5
    %v41 = vshra.s32 %v25, 5
    %v42 = vshra.s32 %v26, 5
    %v43 = vshra.s32 %v27, 5
    %v44 = vshra.s32 %v28, 5
    %v45 = vshra.s32 %v29, 5
    %v46 = vshra.s32 %v30, 5
    %v47 = vshra.s32 %v31, 5
    %v48 = vshra.s32 %v32, 5
    %v49 = vshra.s32 %v33, 5
    %v50 = vshra.s32 %v34, 5
    %v51 = vshra.s32 %v35, 5
    %v52 = vshra.s32 %v36, 5
    %v53 = vshra.s32 %v37, 5
    %v54 = vshra.s32 %v38, 5
    %v55 = vlaneseq
    %v56 = vand.u32 %v55, 127
    %v57 = vshra.s32 %v56, 5
    %vm58 = vcmp.eq.s32.totalorder %v39, %v57
    %vm59 = vcmp.eq.s32.totalorder %v40, %v57
    %vm60 = vcmp.eq.s32.totalorder %v41, %v57
    %vm61 = vcmp.eq.s32.totalorder %v42, %v57
    %vm62 = vcmp.eq.s32.totalorder %v43, %v57
    %vm63 = vcmp.eq.s32.totalorder %v44, %v57
    %vm64 = vcmp.eq.s32.totalorder %v45, %v57
    %vm65 = vcmp.eq.s32.totalorder %v46, %v57
    %vm66 = vcmp.eq.s32.totalorder %v47, %v57
    %vm67 = vcmp.eq.s32.totalorder %v48, %v57
    %vm68 = vcmp.eq.s32.totalorder %v49, %v57
    %vm69 = vcmp.eq.s32.totalorder %v50, %v57
    %vm70 = vcmp.eq.s32.totalorder %v51, %v57
    %vm71 = vcmp.eq.s32.totalorder %v52, %v57
    %vm72 = vcmp.eq.s32.totalorder %v53, %v57
    %vm73 = vcmp.eq.s32.totalorder %v54, %v57
    %v74 = vsel %vm58, 1.0, 0.0
    %v75 = vsel %vm59, 1.0, 0.0
    %v76 = vsel %vm60, 1.0, 0.0
    %v77 = vsel %vm61, 1.0, 0.0
    %v78 = vsel %vm62, 1.0, 0.0
    %v79 = vsel %vm63, 1.0, 0.0
    %v80 = vsel %vm64, 1.0, 0.0
    %v81 = vsel %vm65, 1.0, 0.0
    %v82 = vsel %vm66, 1.0, 0.0
    %v83 = vsel %vm67, 1.0, 0.0
    %v84 = vsel %vm68, 1.0, 0.0
    %v85 = vsel %vm69, 1.0, 0.0
    %v86 = vsel %vm70, 1.0, 0.0
    %v87 = vsel %vm71, 1.0, 0.0
    %v88 = vsel %vm72, 1.0, 0.0
    %v89 = vsel %vm73, 1.0, 0.0
    %v90 = vmul.f32 %v21, %v21
    %91 = vmatprep.subr.mxu0 0.0
    %92 = vmatpush1.msra.mxu0 %v74
    %93 = vmatprep.subr.mxu0 0.0
    %94 = vmatpush1.msra.mxu0 %v75
    %95 = vmatprep.subr.mxu0 0.0
    %96 = vmatpush1.msra.mxu0 %v76
    %97 = vmatprep.subr.mxu0 0.0
    %98 = vmatpush1.msra.mxu0 %v77
    %99 = vmatprep.subr.mxu0 0.0
    %100 = vmatpush1.msra.mxu0 %v78
    %101 = vmatprep.subr.mxu0 0.0
    %102 = vmatpush1.msra.mxu0 %v79
    %103 = vmatprep.subr.mxu0 0.0
    %104 = vmatpush1.msra.mxu0 %v80
    %105 = vmatprep.subr.mxu0 0.0
    %106 = vmatpush1.msra.mxu0 %v81
    %107 = vmatprep.subr.mxu0 0.0
    %108 = vmatpush1.msra.mxu0 %v82
    %109 = vmatprep.subr.mxu0 0.0
    %110 = vmatpush1.msra.mxu0 %v83
    %111 = vmatprep.subr.mxu0 0.0
    %112 = vmatpush1.msra.mxu0 %v84
    %113 = vmatprep.subr.mxu0 0.0
    %114 = vmatpush1.msra.mxu0 %v85
    %115 = vmatprep.subr.mxu0 0.0
    %116 = vmatpush1.msra.mxu0 %v86
    %117 = vmatprep.subr.mxu0 0.0
    %118 = vmatpush1.msra.mxu0 %v87
    %119 = vmatprep.subr.mxu0 0.0
    %120 = vmatpush1.msra.mxu0 %v88
    %121 = vmatprep.subr.mxu0 0.0
    %122 = vmatpush1.msra.mxu0 %v89
    %123 = vmatprep.subr.mxu0 0.0
    %124 = vmatpush1.msra.mxu0 0.0
    %125 = vmatprep.subr.mxu0 0.0
    %126 = vmatpush1.msra.mxu0 0.0
    %127 = vmatprep.subr.mxu0 0.0
    %128 = vmatpush1.msra.mxu0 0.0
    %129 = vmatprep.subr.mxu0 0.0
    %130 = vmatpush1.msra.mxu0 0.0
    %131 = vmatprep.subr.mxu0 0.0
    %132 = vmatpush1.msra.mxu0 0.0
    %133 = vmatprep.subr.mxu0 0.0
    %134 = vmatpush1.msra.mxu0 0.0
    %135 = vmatprep.subr.mxu0 0.0
    %136 = vmatpush1.msra.mxu0 0.0
    %137 = vmatprep.subr.mxu0 0.0
    %138 = vmatpush1.msra.mxu0 0.0
    %139 = vmatprep.subr.mxu0 0.0
    %140 = vmatpush1.msra.mxu0 0.0
    %141 = vmatprep.subr.mxu0 0.0
    %142 = vmatpush1.msra.mxu0 0.0
    %143 = vmatprep.subr.mxu0 0.0
    %144 = vmatpush1.msra.mxu0 0.0
    %145 = vmatprep.subr.mxu0 0.0
    %146 = vmatpush1.msra.mxu0 0.0
    %147 = vmatprep.subr.mxu0 0.0
    %148 = vmatpush1.msra.mxu0 0.0
    %149 = vmatprep.subr.mxu0 0.0
    %150 = vmatpush1.msra.mxu0 0.0
    %151 = vmatprep.subr.mxu0 0.0
    %152 = vmatpush1.msra.mxu0 0.0
    %153 = vmatprep.subr.mxu0 0.0
    %154 = vmatpush1.msra.mxu0 0.0
    %155 = vmatprep.mubr.f32.mxu0 0.0
    %v156 = vand.u32 %v90, 4294901760
    %v157 = vsub.f32 %v90, %v156
    %v158 = vand.u32 %v157, 4294901760
    %v159 = vsub.f32 %v157, %v158
    %v160 = vand.u32 %v159, 4294901760
    %161 = vmatmul.mubr.f32.gmra.mrb[0].mxu0 %v160
    %v162 = vpop.f32.mrb[0].mxu0
    %v163 = vadd.f32 0.0, %v162
    %v164 = vpop.f32.mrb[0].mxu0
    %165 = vdwg.mxu0
    %166 = vmatprep.subr.mxu0 0.0
    %v167 = vsub.f32 %v74, %v74
    %v168 = vand.u32 %v167, 4294901760
    %v169 = vsub.f32 %v167, %v168
    %v170 = vand.u32 %v169, 4294901760
    %171 = vmatpush1.msra.mxu0 %v170
    %172 = vmatprep.subr.mxu0 0.0
    %v173 = vsub.f32 %v75, %v75
    %v174 = vand.u32 %v173, 4294901760
    %v175 = vsub.f32 %v173, %v174
    %v176 = vand.u32 %v175, 4294901760
    %177 = vmatpush1.msra.mxu0 %v176
    %178 = vmatprep.subr.mxu0 0.0
    %v179 = vsub.f32 %v76, %v76
    %v180 = vand.u32 %v179, 4294901760
    %v181 = vsub.f32 %v179, %v180
    %v182 = vand.u32 %v181, 4294901760
    %183 = vmatpush1.msra.mxu0 %v182
    %184 = vmatprep.subr.mxu0 0.0
    %v185 = vsub.f32 %v77, %v77
    %v186 = vand.u32 %v185, 4294901760
    %v187 = vsub.f32 %v185, %v186
    %v188 = vand.u32 %v187, 4294901760
    %189 = vmatpush1.msra.mxu0 %v188
    %190 = vmatprep.subr.mxu0 0.0
    %v191 = vsub.f32 %v78, %v78
    %v192 = vand.u32 %v191, 4294901760
    %v193 = vsub.f32 %v191, %v192
    %v194 = vand.u32 %v193, 4294901760
    %195 = vmatpush1.msra.mxu0 %v194
    %196 = vmatprep.subr.mxu0 0.0
    %v197 = vsub.f32 %v79, %v79
    %v198 = vand.u32 %v197, 4294901760
    %v199 = vsub.f32 %v197, %v198
    %v200 = vand.u32 %v199, 4294901760
    %201 = vmatpush1.msra.mxu0 %v200
    %202 = vmatprep.subr.mxu0 0.0
    %v203 = vsub.f32 %v80, %v80
    %v204 = vand.u32 %v203, 4294901760
    %v205 = vsub.f32 %v203, %v204
    %v206 = vand.u32 %v205, 4294901760
    %207 = vmatpush1.msra.mxu0 %v206
    %208 = vmatprep.subr.mxu0 0.0
    %v209 = vsub.f32 %v81, %v81
    %v210 = vand.u32 %v209, 4294901760
    %v211 = vsub.f32 %v209, %v210
    %v212 = vand.u32 %v211, 4294901760
    %213 = vmatpush1.msra.mxu0 %v212
    %214 = vmatprep.subr.mxu0 0.0
    %v215 = vsub.f32 %v82, %v82
    %v216 = vand.u32 %v215, 4294901760
    %v217 = vsub.f32 %v215, %v216
    %v218 = vand.u32 %v217, 4294901760
    %219 = vmatpush1.msra.mxu0 %v218
    %220 = vmatprep.subr.mxu0 0.0
    %v221 = vsub.f32 %v83, %v83
    %v222 = vand.u32 %v221, 4294901760
    %v223 = vsub.f32 %v221, %v222
    %v224 = vand.u32 %v223, 4294901760
    %225 = vmatpush1.msra.mxu0 %v224
    %226 = vmatprep.subr.mxu0 0.0
    %v227 = vsub.f32 %v84, %v84
    %v228 = vand.u32 %v227, 4294901760
    %v229 = vsub.f32 %v227, %v228
    %v230 = vand.u32 %v229, 4294901760
    %231 = vmatpush1.msra.mxu0 %v230
    %232 = vmatprep.subr.mxu0 0.0
    %v233 = vsub.f32 %v85, %v85
    %v234 = vand.u32 %v233, 4294901760
    %v235 = vsub.f32 %v233, %v234
    %v236 = vand.u32 %v235, 4294901760
    %237 = vmatpush1.msra.mxu0 %v236
    %238 = vmatprep.subr.mxu0 0.0
    %v239 = vsub.f32 %v86, %v86
    %v240 = vand.u32 %v239, 4294901760
    %v241 = vsub.f32 %v239, %v240
    %v242 = vand.u32 %v241, 4294901760
    %243 = vmatpush1.msra.mxu0 %v242
    %244 = vmatprep.subr.mxu0 0.0
    %v245 = vsub.f32 %v87, %v87
    %v246 = vand.u32 %v245, 4294901760
    %v247 = vsub.f32 %v245, %v246
    %v248 = vand.u32 %v247, 4294901760
    %249 = vmatpush1.msra.mxu0 %v248
    %250 = vmatprep.subr.mxu0 0.0
    %v251 = vsub.f32 %v88, %v88
    %v252 = vand.u32 %v251, 4294901760
    %v253 = vsub.f32 %v251, %v252
    %v254 = vand.u32 %v253, 4294901760
    %255 = vmatpush1.msra.mxu0 %v254
    %256 = vmatprep.subr.mxu0 0.0
    %v257 = vsub.f32 %v89, %v89
    %v258 = vand.u32 %v257, 4294901760
    %v259 = vsub.f32 %v257, %v258
    %v260 = vand.u32 %v259, 4294901760
    %261 = vmatpush1.msra.mxu0 %v260
    %262 = vmatprep.subr.mxu0 0.0
    %263 = vmatpush1.msra.mxu0 0.0
    %264 = vmatprep.subr.mxu0 0.0
    %265 = vmatpush1.msra.mxu0 0.0
    %266 = vmatprep.subr.mxu0 0.0
    %267 = vmatpush1.msra.mxu0 0.0
    %268 = vmatprep.subr.mxu0 0.0
    %269 = vmatpush1.msra.mxu0 0.0
    %270 = vmatprep.subr.mxu0 0.0
    %271 = vmatpush1.msra.mxu0 0.0
    %272 = vmatprep.subr.mxu0 0.0
    %273 = vmatpush1.msra.mxu0 0.0
    %274 = vmatprep.subr.mxu0 0.0
    %275 = vmatpush1.msra.mxu0 0.0
    %276 = vmatprep.subr.mxu0 0.0
    %277 = vmatpush1.msra.mxu0 0.0
    %278 = vmatprep.subr.mxu0 0.0
    %279 = vmatpush1.msra.mxu0 0.0
    %280 = vmatprep.subr.mxu0 0.0
    %281 = vmatpush1.msra.mxu0 0.0
    %282 = vmatprep.subr.mxu0 0.0
    %283 = vmatpush1.msra.mxu0 0.0
    %284 = vmatprep.subr.mxu0 0.0
    %285 = vmatpush1.msra.mxu0 0.0
    %286 = vmatprep.subr.mxu0 0.0
    %287 = vmatpush1.msra.mxu0 0.0
    %288 = vmatprep.subr.mxu0 0.0
    %289 = vmatpush1.msra.mxu0 0.0
    %290 = vmatprep.subr.mxu0 0.0
    %291 = vmatpush1.msra.mxu0 0.0
    %292 = vmatprep.subr.mxu0 0.0
    %293 = vmatpush1.msra.mxu0 0.0
    %294 = vmatprep.mubr.f32.mxu0 0.0
    %v295 = vand.u32 %v90, 4294901760
    %296 = vmatmul.mubr.f32.gmra.mrb[0].mxu0 %v295
    %v297 = vpop.f32.mrb[0].mxu0
    %v298 = vadd.f32 %v163, %v297
    %v299 = vpop.f32.mrb[0].mxu0
    %300 = vdwg.mxu0
    %301 = vmatprep.subr.mxu0 0.0
    %v302 = vsub.f32 %v74, %v74
    %303 = vmatpush1.msra.mxu0 %v302
    %304 = vmatprep.subr.mxu0 0.0
    %v305 = vsub.f32 %v75, %v75
    %306 = vmatpush1.msra.mxu0 %v305
    %307 = vmatprep.subr.mxu0 0.0
    %v308 = vsub.f32 %v76, %v76
    %309 = vmatpush1.msra.mxu0 %v308
    %310 = vmatprep.subr.mxu0 0.0
    %v311 = vsub.f32 %v77, %v77
    %312 = vmatpush1.msra.mxu0 %v311
    %313 = vmatprep.subr.mxu0 0.0
    %v314 = vsub.f32 %v78, %v78
    %315 = vmatpush1.msra.mxu0 %v314
    %316 = vmatprep.subr.mxu0 0.0
    %v317 = vsub.f32 %v79, %v79
    %318 = vmatpush1.msra.mxu0 %v317
    %319 = vmatprep.subr.mxu0 0.0
    %v320 = vsub.f32 %v80, %v80
    %321 = vmatpush1.msra.mxu0 %v320
    %322 = vmatprep.subr.mxu0 0.0
    %v323 = vsub.f32 %v81, %v81
    %324 = vmatpush1.msra.mxu0 %v323
    %325 = vmatprep.subr.mxu0 0.0
    %v326 = vsub.f32 %v82, %v82
    %327 = vmatpush1.msra.mxu0 %v326
    %328 = vmatprep.subr.mxu0 0.0
    %v329 = vsub.f32 %v83, %v83
    %330 = vmatpush1.msra.mxu0 %v329
    %331 = vmatprep.subr.mxu0 0.0
    %v332 = vsub.f32 %v84, %v84
    %333 = vmatpush1.msra.mxu0 %v332
    %334 = vmatprep.subr.mxu0 0.0
    %v335 = vsub.f32 %v85, %v85
    %336 = vmatpush1.msra.mxu0 %v335
    %337 = vmatprep.subr.mxu0 0.0
    %v338 = vsub.f32 %v86, %v86
    %339 = vmatpush1.msra.mxu0 %v338
    %340 = vmatprep.subr.mxu0 0.0
    %v341 = vsub.f32 %v87, %v87
    %342 = vmatpush1.msra.mxu0 %v341
    %343 = vmatprep.subr.mxu0 0.0
    %v344 = vsub.f32 %v88, %v88
    %345 = vmatpush1.msra.mxu0 %v344
    %346 = vmatprep.subr.mxu0 0.0
    %v347 = vsub.f32 %v89, %v89
    %348 = vmatpush1.msra.mxu0 %v347
    %349 = vmatprep.subr.mxu0 0.0
    %350 = vmatpush1.msra.mxu0 0.0
    %351 = vmatprep.subr.mxu0 0.0
    %352 = vmatpush1.msra.mxu0 0.0
    %353 = vmatprep.subr.mxu0 0.0
    %354 = vmatpush1.msra.mxu0 0.0
    %355 = vmatprep.subr.mxu0 0.0
    %356 = vmatpush1.msra.mxu0 0.0
    %357 = vmatprep.subr.mxu0 0.0
    %358 = vmatpush1.msra.mxu0 0.0
    %359 = vmatprep.subr.mxu0 0.0
    %360 = vmatpush1.msra.mxu0 0.0
    %361 = vmatprep.subr.mxu0 0.0
    %362 = vmatpush1.msra.mxu0 0.0
    %363 = vmatprep.subr.mxu0 0.0
    %364 = vmatpush1.msra.mxu0 0.0
    %365 = vmatprep.subr.mxu0 0.0
    %366 = vmatpush1.msra.mxu0 0.0
    %367 = vmatprep.subr.mxu0 0.0
    %368 = vmatpush1.msra.mxu0 0.0
    %369 = vmatprep.subr.mxu0 0.0
    %370 = vmatpush1.msra.mxu0 0.0
    %371 = vmatprep.subr.mxu0 0.0
    %372 = vmatpush1.msra.mxu0 0.0
    %373 = vmatprep.subr.mxu0 0.0
    %374 = vmatpush1.msra.mxu0 0.0
    %375 = vmatprep.subr.mxu0 0.0
    %376 = vmatpush1.msra.mxu0 0.0
    %377 = vmatprep.subr.mxu0 0.0
    %378 = vmatpush1.msra.mxu0 0.0
    %379 = vmatprep.subr.mxu0 0.0
    %380 = vmatpush1.msra.mxu0 0.0
    %381 = vmatprep.mubr.f32.mxu0 0.0
    %v382 = vand.u32 %v90, 4294901760
    %v383 = vsub.f32 %v90, %v382
    %384 = vmatmul.mubr.f32.gmra.mrb[0].mxu0 %v383
    %v385 = vpop.f32.mrb[0].mxu0
    %v386 = vadd.f32 %v298, %v385
    %v387 = vpop.f32.mrb[0].mxu0
    %388 = vdwg.mxu0
    %389 = vmatprep.subr.mxu0 0.0
    %390 = vmatpush1.msra.mxu0 %v74
    %391 = vmatprep.subr.mxu0 0.0
    %392 = vmatpush1.msra.mxu0 %v75
    %393 = vmatprep.subr.mxu0 0.0
    %394 = vmatpush1.msra.mxu0 %v76
    %395 = vmatprep.subr.mxu0 0.0
    %396 = vmatpush1.msra.mxu0 %v77
    %397 = vmatprep.subr.mxu0 0.0
    %398 = vmatpush1.msra.mxu0 %v78
    %399 = vmatprep.subr.mxu0 0.0
    %400 = vmatpush1.msra.mxu0 %v79
    %401 = vmatprep.subr.mxu0 0.0
    %402 = vmatpush1.msra.mxu0 %v80
    %403 = vmatprep.subr.mxu0 0.0
    %404 = vmatpush1.msra.mxu0 %v81
    %405 = vmatprep.subr.mxu0 0.0
    %406 = vmatpush1.msra.mxu0 %v82
    %407 = vmatprep.subr.mxu0 0.0
    %408 = vmatpush1.msra.mxu0 %v83
    %409 = vmatprep.subr.mxu0 0.0
    %410 = vmatpush1.msra.mxu0 %v84
    %411 = vmatprep.subr.mxu0 0.0
    %412 = vmatpush1.msra.mxu0 %v85
    %413 = vmatprep.subr.mxu0 0.0
    %414 = vmatpush1.msra.mxu0 %v86
    %415 = vmatprep.subr.mxu0 0.0
    %416 = vmatpush1.msra.mxu0 %v87
    %417 = vmatprep.subr.mxu0 0.0
    %418 = vmatpush1.msra.mxu0 %v88
    %419 = vmatprep.subr.mxu0 0.0
    %420 = vmatpush1.msra.mxu0 %v89
    %421 = vmatprep.subr.mxu0 0.0
    %422 = vmatpush1.msra.mxu0 0.0
    %423 = vmatprep.subr.mxu0 0.0
    %424 = vmatpush1.msra.mxu0 0.0
    %425 = vmatprep.subr.mxu0 0.0
    %426 = vmatpush1.msra.mxu0 0.0
    %427 = vmatprep.subr.mxu0 0.0
    %428 = vmatpush1.msra.mxu0 0.0
    %429 = vmatprep.subr.mxu0 0.0
    %430 = vmatpush1.msra.mxu0 0.0
    %431 = vmatprep.subr.mxu0 0.0
    %432 = vmatpush1.msra.mxu0 0.0
    %433 = vmatprep.subr.mxu0 0.0
    %434 = vmatpush1.msra.mxu0 0.0
    %435 = vmatprep.subr.mxu0 0.0
    %436 = vmatpush1.msra.mxu0 0.0
    %437 = vmatprep.subr.mxu0 0.0
    %438 = vmatpush1.msra.mxu0 0.0
    %439 = vmatprep.subr.mxu0 0.0
    %440 = vmatpush1.msra.mxu0 0.0
    %441 = vmatprep.subr.mxu0 0.0
    %442 = vmatpush1.msra.mxu0 0.0
    %443 = vmatprep.subr.mxu0 0.0
    %444 = vmatpush1.msra.mxu0 0.0
    %445 = vmatprep.subr.mxu0 0.0
    %446 = vmatpush1.msra.mxu0 0.0
    %447 = vmatprep.subr.mxu0 0.0
    %448 = vmatpush1.msra.mxu0 0.0
    %449 = vmatprep.subr.mxu0 0.0
    %450 = vmatpush1.msra.mxu0 0.0
    %451 = vmatprep.subr.mxu0 0.0
    %452 = vmatpush1.msra.mxu0 0.0
    %453 = vmatprep.mubr.f32.mxu0 0.0
    %v454 = vand.u32 %v90, 4294901760
    %v455 = vsub.f32 %v90, %v454
    %v456 = vand.u32 %v455, 4294901760
    %457 = vmatmul.mubr.f32.gmra.mrb[0].mxu0 %v456
    %v458 = vpop.f32.mrb[0].mxu0
    %v459 = vadd.f32 %v386, %v458
    %v460 = vpop.f32.mrb[0].mxu0
    %461 = vdwg.mxu0
    %462 = vmatprep.subr.mxu0 0.0
    %v463 = vsub.f32 %v74, %v74
    %v464 = vand.u32 %v463, 4294901760
    %465 = vmatpush1.msra.mxu0 %v464
    %466 = vmatprep.subr.mxu0 0.0
    %v467 = vsub.f32 %v75, %v75
    %v468 = vand.u32 %v467, 4294901760
    %469 = vmatpush1.msra.mxu0 %v468
    %470 = vmatprep.subr.mxu0 0.0
    %v471 = vsub.f32 %v76, %v76
    %v472 = vand.u32 %v471, 4294901760
    %473 = vmatpush1.msra.mxu0 %v472
    %474 = vmatprep.subr.mxu0 0.0
    %v475 = vsub.f32 %v77, %v77
    %v476 = vand.u32 %v475, 4294901760
    %477 = vmatpush1.msra.mxu0 %v476
    %478 = vmatprep.subr.mxu0 0.0
    %v479 = vsub.f32 %v78, %v78
    %v480 = vand.u32 %v479, 4294901760
    %481 = vmatpush1.msra.mxu0 %v480
    %482 = vmatprep.subr.mxu0 0.0
    %v483 = vsub.f32 %v79, %v79
    %v484 = vand.u32 %v483, 4294901760
    %485 = vmatpush1.msra.mxu0 %v484
    %486 = vmatprep.subr.mxu0 0.0
    %v487 = vsub.f32 %v80, %v80
    %v488 = vand.u32 %v487, 4294901760
    %489 = vmatpush1.msra.mxu0 %v488
    %490 = vmatprep.subr.mxu0 0.0
    %v491 = vsub.f32 %v81, %v81
    %v492 = vand.u32 %v491, 4294901760
    %493 = vmatpush1.msra.mxu0 %v492
    %494 = vmatprep.subr.mxu0 0.0
    %v495 = vsub.f32 %v82, %v82
    %v496 = vand.u32 %v495, 4294901760
    %497 = vmatpush1.msra.mxu0 %v496
    %498 = vmatprep.subr.mxu0 0.0
    %v499 = vsub.f32 %v83, %v83
    %v500 = vand.u32 %v499, 4294901760
    %501 = vmatpush1.msra.mxu0 %v500
    %502 = vmatprep.subr.mxu0 0.0
    %v503 = vsub.f32 %v84, %v84
    %v504 = vand.u32 %v503, 4294901760
    %505 = vmatpush1.msra.mxu0 %v504
    %506 = vmatprep.subr.mxu0 0.0
    %v507 = vsub.f32 %v85, %v85
    %v508 = vand.u32 %v507, 4294901760
    %509 = vmatpush1.msra.mxu0 %v508
    %510 = vmatprep.subr.mxu0 0.0
    %v511 = vsub.f32 %v86, %v86
    %v512 = vand.u32 %v511, 4294901760
    %513 = vmatpush1.msra.mxu0 %v512
    %514 = vmatprep.subr.mxu0 0.0
    %v515 = vsub.f32 %v87, %v87
    %v516 = vand.u32 %v515, 4294901760
    %517 = vmatpush1.msra.mxu0 %v516
    %518 = vmatprep.subr.mxu0 0.0
    %v519 = vsub.f32 %v88, %v88
    %v520 = vand.u32 %v519, 4294901760
    %521 = vmatpush1.msra.mxu0 %v520
    %522 = vmatprep.subr.mxu0 0.0
    %v523 = vsub.f32 %v89, %v89
    %v524 = vand.u32 %v523, 4294901760
    %525 = vmatpush1.msra.mxu0 %v524
    %526 = vmatprep.subr.mxu0 0.0
    %527 = vmatpush1.msra.mxu0 0.0
    %528 = vmatprep.subr.mxu0 0.0
    %529 = vmatpush1.msra.mxu0 0.0
    %530 = vmatprep.subr.mxu0 0.0
    %531 = vmatpush1.msra.mxu0 0.0
    %532 = vmatprep.subr.mxu0 0.0
    %533 = vmatpush1.msra.mxu0 0.0
    %534 = vmatprep.subr.mxu0 0.0
    %535 = vmatpush1.msra.mxu0 0.0
    %536 = vmatprep.subr.mxu0 0.0
    %537 = vmatpush1.msra.mxu0 0.0
    %538 = vmatprep.subr.mxu0 0.0
    %539 = vmatpush1.msra.mxu0 0.0
    %540 = vmatprep.subr.mxu0 0.0
    %541 = vmatpush1.msra.mxu0 0.0
    %542 = vmatprep.subr.mxu0 0.0
    %543 = vmatpush1.msra.mxu0 0.0
    %544 = vmatprep.subr.mxu0 0.0
    %545 = vmatpush1.msra.mxu0 0.0
    %546 = vmatprep.subr.mxu0 0.0
    %547 = vmatpush1.msra.mxu0 0.0
    %548 = vmatprep.subr.mxu0 0.0
    %549 = vmatpush1.msra.mxu0 0.0
    %550 = vmatprep.subr.mxu0 0.0
    %551 = vmatpush1.msra.mxu0 0.0
    %552 = vmatprep.subr.mxu0 0.0
    %553 = vmatpush1.msra.mxu0 0.0
    %554 = vmatprep.subr.mxu0 0.0
    %555 = vmatpush1.msra.mxu0 0.0
    %556 = vmatprep.subr.mxu0 0.0
    %557 = vmatpush1.msra.mxu0 0.0
    %558 = vmatprep.mubr.f32.mxu0 0.0
    %v559 = vand.u32 %v90, 4294901760
    %560 = vmatmul.mubr.f32.gmra.mrb[0].mxu0 %v559
    %v561 = vpop.f32.mrb[0].mxu0
    %v562 = vadd.f32 %v459, %v561
    %v563 = vpop.f32.mrb[0].mxu0
    %564 = vdwg.mxu0
    %565 = vmatprep.subr.mxu0 0.0
    %566 = vmatpush1.msra.mxu0 %v74
    %567 = vmatprep.subr.mxu0 0.0
    %568 = vmatpush1.msra.mxu0 %v75
    %569 = vmatprep.subr.mxu0 0.0
    %570 = vmatpush1.msra.mxu0 %v76
    %571 = vmatprep.subr.mxu0 0.0
    %572 = vmatpush1.msra.mxu0 %v77
    %573 = vmatprep.subr.mxu0 0.0
    %574 = vmatpush1.msra.mxu0 %v78
    %575 = vmatprep.subr.mxu0 0.0
    %576 = vmatpush1.msra.mxu0 %v79
    %577 = vmatprep.subr.mxu0 0.0
    %578 = vmatpush1.msra.mxu0 %v80
    %579 = vmatprep.subr.mxu0 0.0
    %580 = vmatpush1.msra.mxu0 %v81
    %581 = vmatprep.subr.mxu0 0.0
    %582 = vmatpush1.msra.mxu0 %v82
    %583 = vmatprep.subr.mxu0 0.0
    %584 = vmatpush1.msra.mxu0 %v83
    %585 = vmatprep.subr.mxu0 0.0
    %586 = vmatpush1.msra.mxu0 %v84
    %587 = vmatprep.subr.mxu0 0.0
    %588 = vmatpush1.msra.mxu0 %v85
    %589 = vmatprep.subr.mxu0 0.0
    %590 = vmatpush1.msra.mxu0 %v86
    %591 = vmatprep.subr.mxu0 0.0
    %592 = vmatpush1.msra.mxu0 %v87
    %593 = vmatprep.subr.mxu0 0.0
    %594 = vmatpush1.msra.mxu0 %v88
    %595 = vmatprep.subr.mxu0 0.0
    %596 = vmatpush1.msra.mxu0 %v89
    %597 = vmatprep.subr.mxu0 0.0
    %598 = vmatpush1.msra.mxu0 0.0
    %599 = vmatprep.subr.mxu0 0.0
    %600 = vmatpush1.msra.mxu0 0.0
    %601 = vmatprep.subr.mxu0 0.0
    %602 = vmatpush1.msra.mxu0 0.0
    %603 = vmatprep.subr.mxu0 0.0
    %604 = vmatpush1.msra.mxu0 0.0
    %605 = vmatprep.subr.mxu0 0.0
    %606 = vmatpush1.msra.mxu0 0.0
    %607 = vmatprep.subr.mxu0 0.0
    %608 = vmatpush1.msra.mxu0 0.0
    %609 = vmatprep.subr.mxu0 0.0
    %610 = vmatpush1.msra.mxu0 0.0
    %611 = vmatprep.subr.mxu0 0.0
    %612 = vmatpush1.msra.mxu0 0.0
    %613 = vmatprep.subr.mxu0 0.0
    %614 = vmatpush1.msra.mxu0 0.0
    %615 = vmatprep.subr.mxu0 0.0
    %616 = vmatpush1.msra.mxu0 0.0
    %617 = vmatprep.subr.mxu0 0.0
    %618 = vmatpush1.msra.mxu0 0.0
    %619 = vmatprep.subr.mxu0 0.0
    %620 = vmatpush1.msra.mxu0 0.0
    %621 = vmatprep.subr.mxu0 0.0
    %622 = vmatpush1.msra.mxu0 0.0
    %623 = vmatprep.subr.mxu0 0.0
    %624 = vmatpush1.msra.mxu0 0.0
    %625 = vmatprep.subr.mxu0 0.0
    %626 = vmatpush1.msra.mxu0 0.0
    %627 = vmatprep.subr.mxu0 0.0
    %628 = vmatpush1.msra.mxu0 0.0
    %629 = vmatprep.mubr.f32.mxu0 0.0
    %v630 = vand.u32 %v90, 4294901760
    %631 = vmatmul.mubr.f32.gmra.mrb[0].mxu0 %v630
    %v632 = vpop.f32.mrb[0].mxu0
    %v633 = vadd.f32 %v562, %v632
    %v634 = vpop.f32.mrb[0].mxu0
    %635 = vdwg.mxu0
    %v636 = vadd.f32 %v633, 1.0
    %v637 = vmul.f32 %v633, %v636
    %v638 = vmul.f32 %v637, %v636
    %v639 = vadd.f32 %v638, 1e-30
    %v640 = vrsqrt.pop %v639
    %v641 = vmul.f32 %v633, %v640
    %v642 = vmul.f32 %v641, %v21
    %643 = vst [vmem:[#allocation5] sm:$0xf] %v642
    // Predicated region
    $region10: #{tpu_custom_call.1} parent=1 // pred_check
      _
    $region11: #{tpu_custom_call.1} parent=1 // pred_check_branch
      %645 = sbr.rel (0) target = $region13
    $region12: #{tpu_custom_call.1} parent=1 // pred_region
      %s647 = ssub.s32 64, 64
      %648 = vsyncadd [#allocation4], %s647
      %s650 = sshll.u32 [#allocation5], 4
      %s651 = int_to_ptr.vmem [resolvable:$true] %s650
      %653 = dma.vmem_to_hbm [thread:$0]  %s651, 64, %s1, [#allocation4]
    $region13: #{tpu_custom_call.1} parent=1 // pred_fallthru
      _
    // Predicated region
    $region14: #{tpu_custom_call.1} parent=1 // pred_check
      _
    $region15: #{tpu_custom_call.1} parent=1 // pred_check_branch
      %655 = sbr.rel (0) target = $region17
    $region16: #{tpu_custom_call.1} parent=1 // pred_region
      %656 = dma.done [#allocation4], 64
    $region17: #{tpu_custom_call.1} parent=1 // pred_fallthru
      _
    %657 = vsyncpa [#allocation3], 1
    %658 = vsyncpa [#allocation4], 1

</llo_original>
